<compile_context>
chip_gen: v7x
topology: tpu7x:2x2x1
jax: 0.10.0
libtpu: 0.0.40
codegen_flags: <defaults>
</compile_context>

<pallas_src>
import functools

import jax
import jax.numpy as jnp
from jax import lax
from jax.experimental import pallas as pl
from jax.experimental.pallas import tpu as pltpu


# ---------------------------------------------------------------------------
# Kernel
# ---------------------------------------------------------------------------
def _critic_kernel(s_ref, a_ref, ws_ref, wa_ref, bsa_ref, w1_ref, b1_ref,
                   w2_ref, b2_ref, w3_ref, b3_ref, out_ref, *, act_dtype):
    mm_dtype = w1_ref.dtype  # matmul operand dtype (bf16 default); accum is f32

    # Fused input branches:
    #   tanh(state @ [Ws|0] + action @ [0|Wa] + [bs|ba])  -> (TB, 256)
    acc = (
        jnp.dot(s_ref[...], ws_ref[...], preferred_element_type=jnp.float32)
        + jnp.dot(a_ref[...], wa_ref[...], preferred_element_type=jnp.float32)
        + bsa_ref[...]
    )
    h = jnp.tanh(acc.astype(act_dtype)).astype(mm_dtype)

    # Linear(256, 256) + ReLU — single K=256 MXU pass, fed straight from refs.
    h1 = jnp.dot(h, w1_ref[...], preferred_element_type=jnp.float32) + b1_ref[...]
    h1 = jnp.maximum(h1.astype(act_dtype), 0.0).astype(mm_dtype)

    # Linear(256, 64) + Tanh, lane-padded to 128 (pad columns are exact zeros).
    h2 = jnp.dot(h1, w2_ref[...], preferred_element_type=jnp.float32) + b2_ref[...]
    h2 = jnp.tanh(h2.astype(act_dtype)).astype(mm_dtype)

    # Final Linear(64, 1) as an MXU pass producing a lane-dense (1, TB) row:
    #   out[0, b] = sum_k w3[0, k] * h2[b, k]
    out = lax.dot_general(
        w3_ref[...], h2,
        dimension_numbers=(((1,), (1,)), ((), ())),
        preferred_element_type=jnp.float32,
    ) + b3_ref[...]
    out_ref[...] = out.reshape(out_ref.shape).astype(out_ref.dtype)


# ---------------------------------------------------------------------------
# Parameter packing (branch fusion + lane padding)
# ---------------------------------------------------------------------------
def pack_params(params, matmul_dtype=jnp.bfloat16):
    """Fused / lane-padded parameter set consumed by the kernel.

    Matmul operands are cast to `matmul_dtype`; biases stay f32 so adds happen
    at accumulator precision.  Pad columns are true zeros, so padded lanes are
    exactly zero through every layer.
    """
    (ws, bs, wa, ba, w1, b1, w2, b2, w3, b3) = params

    wsp = jnp.pad(ws, ((0, 0), (0, 128)))                 # (s_in, 256) = [Ws | 0]
    wap = jnp.pad(wa, ((0, 0), (128, 0)))                 # (a_in, 256) = [0 | Wa]
    b_sa = jnp.concatenate([bs, ba], axis=1)              # (1, 256)
    w2p = jnp.pad(w2, ((0, 0), (0, 64)))                  # (256, 128)
    b2p = jnp.pad(b2, ((0, 0), (0, 64)))                  # (1, 128)
    w3p = jnp.pad(w3.reshape(1, 64), ((0, 0), (0, 64)))   # (1, 128) row

    cast = lambda w: w.astype(matmul_dtype)
    return (
        cast(wsp), cast(wap), b_sa.astype(jnp.float32),
        cast(w1), b1.astype(jnp.float32),
        cast(w2p), b2p.astype(jnp.float32),
        cast(w3p), b3.reshape(1, 1).astype(jnp.float32),
    )


# ---------------------------------------------------------------------------
# Wrapper
# ---------------------------------------------------------------------------
def atlas_index_critic_forward(state, action, params, *, block_b=2048,
                               matmul_dtype=jnp.bfloat16, activation_dtype=None):
    """state: (B, state_num), action: (B, action_num) -> (B, 1) float32.

    matmul_dtype:     MXU operand dtype. bf16 (default) is the fast path on all
                      generations; jnp.float32 matches the torch module more
                      closely (note: default JAX precision on f32 still uses
                      bf16-pass emulation; set Precision.HIGHEST for bit parity).
    activation_dtype: dtype for tanh/relu math; defaults to matmul_dtype
                      (bf16 EUP/VPU on v6e/v7x). Use jnp.float32 on v5e or for
                      maximum accuracy.
    block_b:          batch tile. 2048 keeps VMEM comfortable on all chips
                      (v5e 16 MiB / v7x 32 MiB scoped defaults); larger tiles
                      get an explicit vmem_limit_bytes bump below.
    """
    assert block_b % 8 == 0, "batch tile must be a multiple of 8 sublanes"
    B, s_in = state.shape
    a_in = action.shape[1]
    act_dtype = matmul_dtype if activation_dtype is None else activation_dtype

    packed = pack_params(params, matmul_dtype)
    state = state.astype(matmul_dtype)    # bf16 DMA for the only batch-scaled read
    action = action.astype(matmul_dtype)

    # Tile selection: biggest tile that fits, but give multi-core chips (v7x)
    # at least 2 "parallel" blocks for large batches.
    tb = min(block_b, B)
    if B >= 1024 and pl.cdiv(B, tb) < 2:
        tb = ((pl.cdiv(B, 2) + 7) // 8) * 8
    num_blocks = pl.cdiv(B, tb)

    def resident(arr):  # weights/biases: same block every iteration -> stay in VMEM
        return pl.BlockSpec(arr.shape, lambda i: (0,) * arr.ndim)

    in_specs = [
        pl.BlockSpec((tb, s_in), lambda i: (i, 0)),
        pl.BlockSpec((tb, a_in), lambda i: (i, 0)),
    ] + [resident(p) for p in packed]
    # Lane-dense output: (num_blocks, 1, tb); block (1, 1, tb) -> full-lane stores.
    out_specs = pl.BlockSpec((1, 1, tb), lambda i: (i, 0, 0))

    cp_kwargs = dict(dimension_semantics=("parallel",))
    if tb > 2048:
        # Larger tiles outgrow the default scoped-VMEM window (v5e: 16 MiB).
        cp_kwargs["vmem_limit_bytes"] = 48 * 1024 * 1024

    out = pl.pallas_call(
        functools.partial(_critic_kernel, act_dtype=act_dtype),
        out_shape=jax.ShapeDtypeStruct((num_blocks, 1, tb), jnp.float32),
        grid=(num_blocks,),
        in_specs=in_specs,
        out_specs=out_specs,
        compiler_params=pltpu.CompilerParams(**cp_kwargs),
    )(state, action, *packed)

    # (num_blocks, 1, tb) -> (B, 1); rows past B (partial last block) are dropped.
    return out.reshape(num_blocks * tb, 1)[:B]


# ---------------------------------------------------------------------------
# Init + pure-JAX reference (unfused, mirrors the PyTorch module)
# ---------------------------------------------------------------------------
def init_params(key, state_num, action_num):
    """Deterministic init mirroring Atlas_Index_Critic._init_weights shapes.

    Weights are stored pre-transposed as [in_features, out_features];
    biases as [1, out_features].
    """
    ks = jax.random.split(key, 10)

    def w(k, shape):  # normal(0, 0.01)
        return (0.01 * jax.random.normal(k, shape)).astype(jnp.float32)

    def b(k, n):      # uniform(-0.1, 0.1)
        return jax.random.uniform(k, (1, n), minval=-0.1, maxval=0.1).astype(jnp.float32)

    ws = w(ks[0], (state_num, 128));  bs = b(ks[1], 128)
    wa = w(ks[2], (action_num, 128)); ba = b(ks[3], 128)
    w1 = w(ks[4], (256, 256));        b1 = b(ks[5], 256)
    w2 = w(ks[6], (256, 64));         b2 = b(ks[7], 64)
    w3 = w(ks[8], (64, 1));           b3 = b(ks[9], 1)
    return (ws, bs, wa, ba, w1, b1, w2, b2, w3, b3)


def reference_forward(state, action, params):
    (ws, bs, wa, ba, w1, b1, w2, b2, w3, b3) = params
    h_s = jnp.tanh(state @ ws + bs)
    h_a = jnp.tanh(action @ wa + ba)
    h = jnp.concatenate([h_s, h_a], axis=1)
    h1 = jnp.maximum(h @ w1 + b1, 0.0)
    h2 = jnp.tanh(h1 @ w2 + b2)
    return h2 @ w3 + b3


# ---------------------------------------------------------------------------
# Self-test
# ---------------------------------------------------------------------------
if __name__ == "__main__":
    state_num, action_num, val_num = 32, 16, 1   # val_num unused by forward
    batch = 8

    key = jax.random.PRNGKey(0)
    k_state, k_action, k_params = jax.random.split(key, 3)

    state = jax.random.normal(k_state, (batch, state_num), dtype=jnp.float32)
    action = jax.random.normal(k_action, (batch, action_num), dtype=jnp.float32)
    params = init_params(k_params, state_num, action_num)
    ref = reference_forward(state, action, params)

    # Default fast path: bf16 matmuls + bf16 activations.
    out = atlas_index_critic_forward(state, action, params)
    out = jax.block_until_ready(out)
    assert out.shape == (batch, 1), out.shape
    assert jnp.allclose(out, ref, atol=3e-2, rtol=3e-2), (out, ref)

    # f32 path (closest to the torch module) — tight tolerance.
    out_f32 = atlas_index_critic_forward(
        state, action, params,
        matmul_dtype=jnp.float32, activation_dtype=jnp.float32)
    out_f32 = jax.block_until_ready(out_f32)
    assert jnp.allclose(out_f32, ref, atol=1e-5, rtol=1e-5), (out_f32, ref)

    # Exercise the multi-block batch grid (grid=(4,), TB=8) and output reshape.
    state_big = jnp.tile(state, (4, 1))
    action_big = jnp.tile(action, (4, 1))
    out_big = atlas_index_critic_forward(state_big, action_big, params, block_b=8)
    out_big = jax.block_until_ready(out_big)
    assert out_big.shape == (4 * batch, 1)
    assert jnp.allclose(out_big, jnp.tile(ref, (4, 1)), atol=3e-2, rtol=3e-2)

    print("KERNEL_OK")
</pallas_src>

<mosaic_0001>
module attributes {stable_mosaic.version = 11 : i64} {
  func.func @_critic_kernel(%arg0: i32, %arg1: memref<8x32xbf16, #tpu.memory_space<vmem>>, %arg2: memref<8x16xbf16, #tpu.memory_space<vmem>>, %arg3: memref<32x256xbf16, #tpu.memory_space<vmem>>, %arg4: memref<16x256xbf16, #tpu.memory_space<vmem>>, %arg5: memref<1x256xf32, #tpu.memory_space<vmem>>, %arg6: memref<256x256xbf16, #tpu.memory_space<vmem>>, %arg7: memref<1x256xf32, #tpu.memory_space<vmem>>, %arg8: memref<256x128xbf16, #tpu.memory_space<vmem>>, %arg9: memref<1x128xf32, #tpu.memory_space<vmem>>, %arg10: memref<1x128xbf16, #tpu.memory_space<vmem>>, %arg11: memref<1x1xf32, #tpu.memory_space<vmem>>, %arg12: memref<1x1x8xf32, #tpu.memory_space<vmem>>) attributes {dimension_semantics = [#tpu.dimension_semantics<parallel>], iteration_bounds = array<i64: 1>, scalar_prefetch = 0 : i64, scratch_operands = 0 : i64, tpu.core_type = #tpu.core_type<tc>, window_params = [{transform_indices = @transform_0, window_bounds = array<i64: 8, 32>}, {transform_indices = @transform_1, window_bounds = array<i64: 8, 16>}, {pipeline_mode = #tpu.pipeline_mode<synchronous>, transform_indices = @transform_2, window_bounds = array<i64: 32, 256>}, {pipeline_mode = #tpu.pipeline_mode<synchronous>, transform_indices = @transform_3, window_bounds = array<i64: 16, 256>}, {pipeline_mode = #tpu.pipeline_mode<synchronous>, transform_indices = @transform_4, window_bounds = array<i64: 1, 256>}, {pipeline_mode = #tpu.pipeline_mode<synchronous>, transform_indices = @transform_5, window_bounds = array<i64: 256, 256>}, {pipeline_mode = #tpu.pipeline_mode<synchronous>, transform_indices = @transform_6, window_bounds = array<i64: 1, 256>}, {pipeline_mode = #tpu.pipeline_mode<synchronous>, transform_indices = @transform_7, window_bounds = array<i64: 256, 128>}, {pipeline_mode = #tpu.pipeline_mode<synchronous>, transform_indices = @transform_8, window_bounds = array<i64: 1, 128>}, {pipeline_mode = #tpu.pipeline_mode<synchronous>, transform_indices = @transform_9, window_bounds = array<i64: 1, 128>}, {pipeline_mode = #tpu.pipeline_mode<synchronous>, transform_indices = @transform_10, window_bounds = array<i64: 1, 1>}, {transform_indices = @transform_11, window_bounds = array<i64: 1, 1, 8>}]} {
    %c0 = arith.constant 0 : index
    %c0_0 = arith.constant 0 : index
    %0 = vector.load %arg1[%c0, %c0_0] : memref<8x32xbf16, #tpu.memory_space<vmem>>, vector<8x32xbf16>
    %c0_1 = arith.constant 0 : index
    %c0_2 = arith.constant 0 : index
    %1 = vector.load %arg3[%c0_1, %c0_2] : memref<32x256xbf16, #tpu.memory_space<vmem>>, vector<32x256xbf16>
    %cst = arith.constant dense<0.000000e+00> : vector<8x256xf32>
    %2 = tpu.matmul %0, %1, %cst {dimension_numbers = #tpu.dot_dimension_numbers<[1], [0], [0], [1], [0, 0, 1, 1], [], []>} : vector<8x32xbf16>, vector<32x256xbf16>, vector<8x256xf32> -> vector<8x256xf32>
    %c0_3 = arith.constant 0 : index
    %c0_4 = arith.constant 0 : index
    %3 = vector.load %arg2[%c0_3, %c0_4] : memref<8x16xbf16, #tpu.memory_space<vmem>>, vector<8x16xbf16>
    %c0_5 = arith.constant 0 : index
    %c0_6 = arith.constant 0 : index
    %4 = vector.load %arg4[%c0_5, %c0_6] : memref<16x256xbf16, #tpu.memory_space<vmem>>, vector<16x256xbf16>
    %cst_7 = arith.constant dense<0.000000e+00> : vector<8x256xf32>
    %5 = tpu.matmul %3, %4, %cst_7 {dimension_numbers = #tpu.dot_dimension_numbers<[1], [0], [0], [1], [0, 0, 1, 1], [], []>} : vector<8x16xbf16>, vector<16x256xbf16>, vector<8x256xf32> -> vector<8x256xf32>
    %6 = arith.addf %2, %5 : vector<8x256xf32>
    %c0_8 = arith.constant 0 : index
    %c0_9 = arith.constant 0 : index
    %7 = vector.load %arg5[%c0_8, %c0_9] : memref<1x256xf32, #tpu.memory_space<vmem>>, vector<1x256xf32>
    %8 = vector.broadcast %7 : vector<1x256xf32> to vector<8x256xf32>
    %9 = arith.addf %6, %8 : vector<8x256xf32>
    %10 = arith.truncf %9 : vector<8x256xf32> to vector<8x256xbf16>
    %11 = math.tanh %10 : vector<8x256xbf16>
    %c0_10 = arith.constant 0 : index
    %c0_11 = arith.constant 0 : index
    %12 = vector.load %arg6[%c0_10, %c0_11] : memref<256x256xbf16, #tpu.memory_space<vmem>>, vector<256x256xbf16>
    %cst_12 = arith.constant dense<0.000000e+00> : vector<8x256xf32>
    %13 = tpu.matmul %11, %12, %cst_12 {dimension_numbers = #tpu.dot_dimension_numbers<[1], [0], [0], [1], [0, 0, 1, 1], [], []>} : vector<8x256xbf16>, vector<256x256xbf16>, vector<8x256xf32> -> vector<8x256xf32>
    %c0_13 = arith.constant 0 : index
    %c0_14 = arith.constant 0 : index
    %14 = vector.load %arg7[%c0_13, %c0_14] : memref<1x256xf32, #tpu.memory_space<vmem>>, vector<1x256xf32>
    %15 = vector.broadcast %14 : vector<1x256xf32> to vector<8x256xf32>
    %16 = arith.addf %13, %15 : vector<8x256xf32>
    %17 = arith.truncf %16 : vector<8x256xf32> to vector<8x256xbf16>
    %cst_15 = arith.constant 0.000000e+00 : bf16
    %18 = vector.broadcast %cst_15 : bf16 to vector<8x256xbf16>
    %19 = arith.maximumf %17, %18 : vector<8x256xbf16>
    %c0_16 = arith.constant 0 : index
    %c0_17 = arith.constant 0 : index
    %20 = vector.load %arg8[%c0_16, %c0_17] : memref<256x128xbf16, #tpu.memory_space<vmem>>, vector<256x128xbf16>
    %cst_18 = arith.constant dense<0.000000e+00> : vector<8x128xf32>
    %21 = tpu.matmul %19, %20, %cst_18 {dimension_numbers = #tpu.dot_dimension_numbers<[1], [0], [0], [1], [0, 0, 1, 1], [], []>} : vector<8x256xbf16>, vector<256x128xbf16>, vector<8x128xf32> -> vector<8x128xf32>
    %c0_19 = arith.constant 0 : index
    %c0_20 = arith.constant 0 : index
    %22 = vector.load %arg9[%c0_19, %c0_20] : memref<1x128xf32, #tpu.memory_space<vmem>>, vector<1x128xf32>
    %23 = vector.broadcast %22 : vector<1x128xf32> to vector<8x128xf32>
    %24 = arith.addf %21, %23 : vector<8x128xf32>
    %25 = arith.truncf %24 : vector<8x128xf32> to vector<8x128xbf16>
    %26 = math.tanh %25 : vector<8x128xbf16>
    %c0_21 = arith.constant 0 : index
    %c0_22 = arith.constant 0 : index
    %27 = vector.load %arg10[%c0_21, %c0_22] : memref<1x128xbf16, #tpu.memory_space<vmem>>, vector<1x128xbf16>
    %cst_23 = arith.constant dense<0.000000e+00> : vector<1x8xf32>
    %28 = tpu.matmul %27, %26, %cst_23 {dimension_numbers = #tpu.dot_dimension_numbers<[1], [1], [0], [0], [0, 0, 1, 0], [], []>} : vector<1x128xbf16>, vector<8x128xbf16>, vector<1x8xf32> -> vector<1x8xf32>
    %c0_24 = arith.constant 0 : index
    %c0_25 = arith.constant 0 : index
    %29 = vector.load %arg11[%c0_24, %c0_25] : memref<1x1xf32, #tpu.memory_space<vmem>>, vector<1x1xf32>
    %30 = vector.broadcast %29 : vector<1x1xf32> to vector<1x8xf32>
    %31 = arith.addf %28, %30 : vector<1x8xf32>
    %32 = vector.shape_cast %31 : vector<1x8xf32> to vector<1x1x8xf32>
    %c0_26 = arith.constant 0 : index
    %c0_27 = arith.constant 0 : index
    %c0_28 = arith.constant 0 : index
    %33 = vector.load %arg12[%c0_26, %c0_27, %c0_28] : memref<1x1x8xf32, #tpu.memory_space<vmem>>, vector<1x1x8xf32>
    tpu.vector_store %arg12[%c0_26, %c0_27, %c0_28], %32 {strides = array<i32>} : memref<1x1x8xf32, #tpu.memory_space<vmem>>, vector<1x1x8xf32>,
    return
  }
  func.func @transform_0(%arg0: i32) -> (i32, i32) {
    %c0_i32 = arith.constant 0 : i32
    %c0_i32_0 = arith.constant 0 : i32
    return %arg0, %c0_i32 : i32, i32
  }
  func.func @transform_1(%arg0: i32) -> (i32, i32) {
    %c0_i32 = arith.constant 0 : i32
    %c0_i32_0 = arith.constant 0 : i32
    return %arg0, %c0_i32 : i32, i32
  }
  func.func @transform_2(%arg0: i32) -> (i32, i32) {
    %c0_i32 = arith.constant 0 : i32
    %c0_i32_0 = arith.constant 0 : i32
    %c0_i32_1 = arith.constant 0 : i32
    return %c0_i32, %c0_i32_0 : i32, i32
  }
  func.func @transform_3(%arg0: i32) -> (i32, i32) {
    %c0_i32 = arith.constant 0 : i32
    %c0_i32_0 = arith.constant 0 : i32
    %c0_i32_1 = arith.constant 0 : i32
    return %c0_i32, %c0_i32_0 : i32, i32
  }
  func.func @transform_4(%arg0: i32) -> (i32, i32) {
    %c0_i32 = arith.constant 0 : i32
    %c0_i32_0 = arith.constant 0 : i32
    %c0_i32_1 = arith.constant 0 : i32
    return %c0_i32, %c0_i32_0 : i32, i32
  }
  func.func @transform_5(%arg0: i32) -> (i32, i32) {
    %c0_i32 = arith.constant 0 : i32
    %c0_i32_0 = arith.constant 0 : i32
    %c0_i32_1 = arith.constant 0 : i32
    return %c0_i32, %c0_i32_0 : i32, i32
  }
  func.func @transform_6(%arg0: i32) -> (i32, i32) {
    %c0_i32 = arith.constant 0 : i32
    %c0_i32_0 = arith.constant 0 : i32
    %c0_i32_1 = arith.constant 0 : i32
    return %c0_i32, %c0_i32_0 : i32, i32
  }
  func.func @transform_7(%arg0: i32) -> (i32, i32) {
    %c0_i32 = arith.constant 0 : i32
    %c0_i32_0 = arith.constant 0 : i32
    %c0_i32_1 = arith.constant 0 : i32
    return %c0_i32, %c0_i32_0 : i32, i32
  }
  func.func @transform_8(%arg0: i32) -> (i32, i32) {
    %c0_i32 = arith.constant 0 : i32
    %c0_i32_0 = arith.constant 0 : i32
    %c0_i32_1 = arith.constant 0 : i32
    return %c0_i32, %c0_i32_0 : i32, i32
  }
  func.func @transform_9(%arg0: i32) -> (i32, i32) {
    %c0_i32 = arith.constant 0 : i32
    %c0_i32_0 = arith.constant 0 : i32
    %c0_i32_1 = arith.constant 0 : i32
    return %c0_i32, %c0_i32_0 : i32, i32
  }
  func.func @transform_10(%arg0: i32) -> (i32, i32) {
    %c0_i32 = arith.constant 0 : i32
    %c0_i32_0 = arith.constant 0 : i32
    %c0_i32_1 = arith.constant 0 : i32
    return %c0_i32, %c0_i32_0 : i32, i32
  }
  func.func @transform_11(%arg0: i32) -> (i32, i32, i32) {
    %c0_i32 = arith.constant 0 : i32
    %c0_i32_0 = arith.constant 0 : i32
    %c0_i32_1 = arith.constant 0 : i32
    return %arg0, %c0_i32, %c0_i32_0 : i32, i32, i32
  }
}

</mosaic_0001>

<llo_original>
// kernel: tpu_custom_call.1
$region0: #{tpu_custom_call.1}
  #allocation0 [shape = 'u32[]', space=smem, size = 0x4, offset = 0x4, fixed_abs, tag = 'smem constant byte address 0x4 - core index']
  #allocation1 [shape = 'u32[144,128]{1,0:T(1,128)}', space=vmem, size = 0x12000, scoped, tag = 'internal scratch']
  #allocation2 [shape = 'f32[1,1]{1,0:T(1,128)S(1)}', space=vmem, size = 0x200, scoped, tag = 'scoped memory for tpu_custom_call.1']
  %s0 = inlined_call_operand.hbm [shape: bf16[8,32], index: 0, kind: input, shape index: {}]
  %s1 = inlined_call_operand.vmem [shape: bf16[8,16], index: 1, kind: input, shape index: {}]
  %s2 = inlined_call_operand.hbm [shape: bf16[32,256], index: 2, kind: input, shape index: {}]
  %s3 = inlined_call_operand.hbm [shape: bf16[16,256], index: 3, kind: input, shape index: {}]
  %s4 = inlined_call_operand.vmem [shape: f32[1,256], index: 4, kind: input, shape index: {}]
  %s5 = inlined_call_operand.hbm [shape: bf16[256,256], index: 5, kind: input, shape index: {}]
  %s6 = inlined_call_operand.vmem [shape: f32[1,256], index: 6, kind: input, shape index: {}]
  %s7 = inlined_call_operand.hbm [shape: bf16[256,128], index: 7, kind: input, shape index: {}]
  %s8 = inlined_call_operand.vmem [shape: f32[1,128], index: 8, kind: input, shape index: {}]
  %s9 = inlined_call_operand.vmem [shape: bf16[1,128], index: 9, kind: input, shape index: {}]
  %s10 = inlined_call_operand.<no memory space> [shape: f32[1,1], index: 10, kind: input, shape index: {}]
  %s11 = inlined_call_operand.hbm [shape: f32[1,1,8], index: 11, kind: output, shape index: {}]
  %s12 = sld [smem:[#allocation0]]
  $region74: #{tpu_custom_call.1} parent=0
    _
  %s14 = ssub.s32 1, %s12
  %s15 = scalar_select 0, %s14, %s12
  %v16 = vstv %s10
  %17 = vst [vmem:[#allocation2] sm:$0x1] %v16
  $region1: #{tpu_custom_call.1} parent=0
    #allocation3 [shape = 'u8[2048]{0}', space=vmem, size = 0x800, scoped, tag = 'input window, operand 0, single buffered']
    #allocation4 [shape = 's32[1]{0}', space=sflag, size = 0x4, scoped, tag = 'scoped memory for tpu_custom_call.1']
    #allocation5 [shape = 's32[1]{0}', space=sflag, size = 0x4, scoped, tag = 'scoped memory for tpu_custom_call.1']
    #allocation6 [shape = 'u8[16384]{0}', space=vmem, size = 0x4000, scoped, tag = 'input window, operand 2, single buffered']
    #allocation7 [shape = 's32[1]{0}', space=sflag, size = 0x4, scoped, tag = 'scoped memory for tpu_custom_call.1']
    #allocation8 [shape = 'u8[8192]{0}', space=vmem, size = 0x2000, scoped, tag = 'input window, operand 3, single buffered']
    #allocation9 [shape = 'u8[131072]{0}', space=vmem, size = 0x20000, scoped, tag = 'input window, operand 5, single buffered']
    #allocation10 [shape = 's32[1]{0}', space=sflag, size = 0x4, scoped, tag = 'scoped memory for tpu_custom_call.1']
    #allocation11 [shape = 'u8[65536]{0}', space=vmem, size = 0x10000, scoped, tag = 'input window, operand 7, single buffered']
    #allocation12 [shape = 'u8[512]{0}', space=vmem, size = 0x400, scoped, tag = 'output window, operand 0, single buffered']
    %18 = vsyncpa [#allocation4], 0
    %19 = vsyncpa [#allocation7], 0
    %20 = vsyncpa [#allocation10], 0
    %21 = vsyncpa [#allocation5], 0
    // Predicated region
    $region2: #{tpu_custom_call.1} parent=1 // pred_check
      _
    $region3: #{tpu_custom_call.1} parent=1 // pred_check_branch
      %23 = sbr.rel (0) target = $region5
    $region4: #{tpu_custom_call.1} parent=1 // pred_region
      %s25 = ssub.s32 64, 64
      %26 = vsyncadd [#allocation4], %s25
      %s28 = sshll.u32 [#allocation3], 4
      %s29 = int_to_ptr.vmem [resolvable:$true] %s28
      %31 = dma.hbm_to_vmem [thread:$0]  %s0, 64, %s29, [#allocation4]
    $region5: #{tpu_custom_call.1} parent=1 // pred_fallthru
      _
    // Predicated region
    $region6: #{tpu_custom_call.1} parent=1 // pred_check
      _
    $region7: #{tpu_custom_call.1} parent=1 // pred_check_branch
      %33 = sbr.rel (0) target = $region9
    $region8: #{tpu_custom_call.1} parent=1 // pred_region
      _
    $region9: #{tpu_custom_call.1} parent=1 // pred_fallthru
      _
    // Predicated region
    $region10: #{tpu_custom_call.1} parent=1 // pred_check
      _
    $region11: #{tpu_custom_call.1} parent=1 // pred_check_branch
      %35 = sbr.rel (0) target = $region13
    $region12: #{tpu_custom_call.1} parent=1 // pred_region
      %s37 = ssub.s32 512, 512
      %38 = vsyncadd [#allocation7], %s37
      %s39 = sshll.u32 [#allocation6], 4
      %s40 = int_to_ptr.vmem [resolvable:$true] %s39
      %45 = dma.hbm_to_vmem [thread:$0]  %s2, 512, %s40, [#allocation7], 128, 128, 8
    $region13: #{tpu_custom_call.1} parent=1 // pred_fallthru
      _
    // Predicated region
    $region14: #{tpu_custom_call.1} parent=1 // pred_check
      _
    $region15: #{tpu_custom_call.1} parent=1 // pred_check_branch
      %47 = sbr.rel (0) target = $region17
    $region16: #{tpu_custom_call.1} parent=1 // pred_region
      %s49 = ssub.s32 256, 256
      %50 = vsyncadd [#allocation7], %s49
      %s51 = sshll.u32 [#allocation8], 4
      %s52 = int_to_ptr.vmem [resolvable:$true] %s51
      %57 = dma.hbm_to_vmem [thread:$0]  %s3, 256, %s52, [#allocation7], 128, 128, 8
    $region17: #{tpu_custom_call.1} parent=1 // pred_fallthru
      _
    // Predicated region
    $region18: #{tpu_custom_call.1} parent=1 // pred_check
      _
    $region19: #{tpu_custom_call.1} parent=1 // pred_check_branch
      %59 = sbr.rel (0) target = $region21
    $region20: #{tpu_custom_call.1} parent=1 // pred_region
      _
    $region21: #{tpu_custom_call.1} parent=1 // pred_fallthru
      _
    // Predicated region
    $region22: #{tpu_custom_call.1} parent=1 // pred_check
      _
    $region23: #{tpu_custom_call.1} parent=1 // pred_check_branch
      %61 = sbr.rel (0) target = $region25
    $region24: #{tpu_custom_call.1} parent=1 // pred_region
      %s63 = ssub.s32 4096, 4096
      %64 = vsyncadd [#allocation10], %s63
      %s65 = sshll.u32 [#allocation9], 4
      %s66 = int_to_ptr.vmem [resolvable:$true] %s65
      %71 = dma.hbm_to_vmem [thread:$0]  %s5, 4096, %s66, [#allocation10], 128, 128, 8
    $region25: #{tpu_custom_call.1} parent=1 // pred_fallthru
      _
    // Predicated region
    $region26: #{tpu_custom_call.1} parent=1 // pred_check
      _
    $region27: #{tpu_custom_call.1} parent=1 // pred_check_branch
      %73 = sbr.rel (0) target = $region29
    $region28: #{tpu_custom_call.1} parent=1 // pred_region
      _
    $region29: #{tpu_custom_call.1} parent=1 // pred_fallthru
      _
    // Predicated region
    $region30: #{tpu_custom_call.1} parent=1 // pred_check
      _
    $region31: #{tpu_custom_call.1} parent=1 // pred_check_branch
      %75 = sbr.rel (0) target = $region33
    $region32: #{tpu_custom_call.1} parent=1 // pred_region
      %s77 = ssub.s32 2048, 2048
      %78 = vsyncadd [#allocation10], %s77
      %s79 = sshll.u32 [#allocation11], 4
      %s80 = int_to_ptr.vmem [resolvable:$true] %s79
      %85 = dma.hbm_to_vmem [thread:$0]  %s7, 2048, %s80, [#allocation10], 64, 64, 4
    $region33: #{tpu_custom_call.1} parent=1 // pred_fallthru
      _
    // Predicated region
    $region34: #{tpu_custom_call.1} parent=1 // pred_check
      _
    $region35: #{tpu_custom_call.1} parent=1 // pred_check_branch
      %87 = sbr.rel (0) target = $region37
    $region36: #{tpu_custom_call.1} parent=1 // pred_region
      _
    $region37: #{tpu_custom_call.1} parent=1 // pred_fallthru
      _
    // Predicated region
    $region38: #{tpu_custom_call.1} parent=1 // pred_check
      _
    $region39: #{tpu_custom_call.1} parent=1 // pred_check_branch
      %89 = sbr.rel (0) target = $region41
    $region40: #{tpu_custom_call.1} parent=1 // pred_region
      _
    $region41: #{tpu_custom_call.1} parent=1 // pred_fallthru
      _
    // Predicated region
    $region42: #{tpu_custom_call.1} parent=1 // pred_check
      _
    $region43: #{tpu_custom_call.1} parent=1 // pred_check_branch
      %91 = sbr.rel (0) target = $region45
    $region44: #{tpu_custom_call.1} parent=1 // pred_region
      _
    $region45: #{tpu_custom_call.1} parent=1 // pred_fallthru
      _
    // Predicated region
    $region46: #{tpu_custom_call.1} parent=1 // pred_check
      _
    $region47: #{tpu_custom_call.1} parent=1 // pred_check_branch
      %93 = sbr.rel (0) target = $region49
    $region48: #{tpu_custom_call.1} parent=1 // pred_region
      %94 = dma.done [#allocation4], 64
    $region49: #{tpu_custom_call.1} parent=1 // pred_fallthru
      _
    // Predicated region
    $region50: #{tpu_custom_call.1} parent=1 // pred_check
      _
    $region51: #{tpu_custom_call.1} parent=1 // pred_check_branch
      %96 = sbr.rel (0) target = $region53
    $region52: #{tpu_custom_call.1} parent=1 // pred_region
      %97 = dma.done [#allocation7], 512
    $region53: #{tpu_custom_call.1} parent=1 // pred_fallthru
      _
    // Predicated region
    $region54: #{tpu_custom_call.1} parent=1 // pred_check
      _
    $region55: #{tpu_custom_call.1} parent=1 // pred_check_branch
      %99 = sbr.rel (0) target = $region57
    $region56: #{tpu_custom_call.1} parent=1 // pred_region
      %100 = dma.done [#allocation7], 256
    $region57: #{tpu_custom_call.1} parent=1 // pred_fallthru
      _
    // Predicated region
    $region58: #{tpu_custom_call.1} parent=1 // pred_check
      _
    $region59: #{tpu_custom_call.1} parent=1 // pred_check_branch
      %102 = sbr.rel (0) target = $region61
    $region60: #{tpu_custom_call.1} parent=1 // pred_region
      %103 = dma.done [#allocation10], 4096
    $region61: #{tpu_custom_call.1} parent=1 // pred_fallthru
      _
    // Predicated region
    $region62: #{tpu_custom_call.1} parent=1 // pred_check
      _
    $region63: #{tpu_custom_call.1} parent=1 // pred_check_branch
      %105 = sbr.rel (0) target = $region65
    $region64: #{tpu_custom_call.1} parent=1 // pred_region
      %106 = dma.done [#allocation10], 2048
    $region65: #{tpu_custom_call.1} parent=1 // pred_fallthru
      _
    %v108 = vld [vmem:[#allocation3] sm:$0xf]
    %v109 = vld [vmem:[#allocation6] sm:$0xff]
    %v110 = vld [vmem:[#allocation6 + $0x8] sm:$0xff]
    %v111 = vld [vmem:[#allocation6 + $0x10] sm:$0xff]
    %v112 = vld [vmem:[#allocation6 + $0x18] sm:$0xff]
    %v113 = vld [vmem:[%s1] sm:$0xf]
    %v114 = vld [vmem:[#allocation8] sm:$0xff]
    %v115 = vld [vmem:[#allocation8 + $0x8] sm:$0xff]
    %v118 = vunpack.c.l.b16 %v114
    %v119 = vunpack.c.h.b16 %v114
    %v120 = vunpack.c.l.b16 %v115
    %v121 = vunpack.c.h.b16 %v115
    %v122 = vpack.c.b16 %v120, %v118
    %v123 = vpack.c.b16 %v121, %v119
    %vm126 = vcmask 130048
    %v128 = vsel %vm126, %v113, 0
    %130 = vmatprep.subr.bf16.mxu0 %v123
    %131 = vmatpush1.bf16.msra.mxu0 %v122
    %132 = vmatprep.subr.bf16.mxu0 0
    %133 = vmatpush1.bf16.msra.mxu0 0
    %134 = vmatprep.subr.bf16.mxu0 0
    %135 = vmatpush1.bf16.msra.mxu0 0
    %136 = vmatprep.subr.bf16.mxu0 0
    %137 = vmatpush1.bf16.msra.mxu0 0
    %138 = vmatprep.subr.bf16.mxu0 0
    %139 = vmatpush1.bf16.msra.mxu0 0
    %140 = vmatprep.subr.bf16.mxu0 0
    %141 = vmatpush1.bf16.msra.mxu0 0
    %142 = vmatprep.subr.bf16.mxu0 0
    %143 = vmatpush1.bf16.msra.mxu0 0
    %144 = vmatprep.subr.bf16.mxu0 0
    %145 = vmatpush1.bf16.msra.mxu0 0
    %146 = vmatprep.subr.bf16.mxu0 0
    %147 = vmatpush1.bf16.msra.mxu0 0
    %148 = vmatprep.subr.bf16.mxu0 0
    %149 = vmatpush1.bf16.msra.mxu0 0
    %150 = vmatprep.subr.bf16.mxu0 0
    %151 = vmatpush1.bf16.msra.mxu0 0
    %152 = vmatprep.subr.bf16.mxu0 0
    %153 = vmatpush1.bf16.msra.mxu0 0
    %154 = vmatprep.subr.bf16.mxu0 0
    %155 = vmatpush1.bf16.msra.mxu0 0
    %156 = vmatprep.subr.bf16.mxu0 0
    %157 = vmatpush1.bf16.msra.mxu0 0
    %158 = vmatprep.subr.bf16.mxu0 0
    %159 = vmatpush1.bf16.msra.mxu0 0
    %160 = vmatprep.subr.bf16.mxu0 0
    %161 = vmatpush1.bf16.msra.mxu0 0
    %162 = vmatprep.mubr.bf16.mxu0 0
    %163 = vmatmul.mubr.bf16.gmra.mrb[0].mxu0 %v128
    %v164 = vpop.f32.mrb[0].mxu0
    %v165 = vadd.f32 0.0, %v164
    %v166 = vpop.f32.mrb[0].mxu0
    %v167 = vadd.f32 0.0, %v166
    %v168 = vpop.f32.mrb[0].mxu0
    %v169 = vpop.f32.mrb[0].mxu0
    %170 = vdwg.mxu0
    %v175 = vunpack.c.l.b16 %v109
    %v176 = vunpack.c.h.b16 %v109
    %v177 = vunpack.c.l.b16 %v110
    %v178 = vunpack.c.h.b16 %v110
    %v179 = vunpack.c.l.b16 %v111
    %v180 = vunpack.c.h.b16 %v111
    %v181 = vunpack.c.l.b16 %v112
    %v182 = vunpack.c.h.b16 %v112
    %v183 = vpack.c.b16 %v177, %v175
    %v184 = vpack.c.b16 %v178, %v176
    %v185 = vpack.c.b16 %v181, %v179
    %v186 = vpack.c.b16 %v182, %v180
    %vm191 = vcmask 261120
    %v193 = vsel %vm191, %v108, 0
    %195 = vmatprep.subr.bf16.mxu0 %v184
    %196 = vmatpush1.bf16.msra.mxu0 %v183
    %197 = vmatprep.subr.bf16.mxu0 %v186
    %198 = vmatpush1.bf16.msra.mxu0 %v185
    %199 = vmatprep.subr.bf16.mxu0 0
    %200 = vmatpush1.bf16.msra.mxu0 0
    %201 = vmatprep.subr.bf16.mxu0 0
    %202 = vmatpush1.bf16.msra.mxu0 0
    %203 = vmatprep.subr.bf16.mxu0 0
    %204 = vmatpush1.bf16.msra.mxu0 0
    %205 = vmatprep.subr.bf16.mxu0 0
    %206 = vmatpush1.bf16.msra.mxu0 0
    %207 = vmatprep.subr.bf16.mxu0 0
    %208 = vmatpush1.bf16.msra.mxu0 0
    %209 = vmatprep.subr.bf16.mxu0 0
    %210 = vmatpush1.bf16.msra.mxu0 0
    %211 = vmatprep.subr.bf16.mxu0 0
    %212 = vmatpush1.bf16.msra.mxu0 0
    %213 = vmatprep.subr.bf16.mxu0 0
    %214 = vmatpush1.bf16.msra.mxu0 0
    %215 = vmatprep.subr.bf16.mxu0 0
    %216 = vmatpush1.bf16.msra.mxu0 0
    %217 = vmatprep.subr.bf16.mxu0 0
    %218 = vmatpush1.bf16.msra.mxu0 0
    %219 = vmatprep.subr.bf16.mxu0 0
    %220 = vmatpush1.bf16.msra.mxu0 0
    %221 = vmatprep.subr.bf16.mxu0 0
    %222 = vmatpush1.bf16.msra.mxu0 0
    %223 = vmatprep.subr.bf16.mxu0 0
    %224 = vmatpush1.bf16.msra.mxu0 0
    %225 = vmatprep.subr.bf16.mxu0 0
    %226 = vmatpush1.bf16.msra.mxu0 0
    %227 = vmatprep.mubr.bf16.mxu0 0
    %228 = vmatmul.mubr.bf16.gmra.mrb[0].mxu0 %v193
    %v229 = vpop.f32.mrb[0].mxu0
    %v230 = vadd.f32 %v165, %v229
    %v231 = vpop.f32.mrb[0].mxu0
    %v232 = vadd.f32 %v167, %v231
    %v233 = vpop.f32.mrb[0].mxu0
    %v234 = vpop.f32.mrb[0].mxu0
    %235 = vdwg.mxu0
    %v236 = vld [vmem:[%s4] sm:$0x3]
    %v238 = vlaneseq
    %v239 = vshrl.u32 %v238, 7
    %v240 = vsub.s32 0, %v239
    %v241 = vrot.slane %v236, %v240
    %v242 = vlaneseq
    %v243 = vshrl.u32 %v242, 7
    %v244 = vsub.s32 1, %v243
    %v245 = vrot.slane %v236, %v244
    %v248 = vadd.f32 %v230, %v241
    %v249 = vadd.f32 %v232, %v245
    %v250 = vpack.c.bf16 %v248, %v248
    %v251 = vpack.c.bf16 %v249, %v249
    %v252 = vtanh.bf16.pop %v250
    %v253 = vtanh.bf16.pop %v251
    %v254 = vld [vmem:[#allocation9] sm:$0xff]
    %v255 = vld [vmem:[#allocation9 + $0x8] sm:$0xff]
    %v256 = vld [vmem:[#allocation9 + $0x10] sm:$0xff]
    %v257 = vld [vmem:[#allocation9 + $0x18] sm:$0xff]
    %v258 = vld [vmem:[#allocation9 + $0x20] sm:$0xff]
    %v259 = vld [vmem:[#allocation9 + $0x28] sm:$0xff]
    %v260 = vld [vmem:[#allocation9 + $0x30] sm:$0xff]
    %v261 = vld [vmem:[#allocation9 + $0x38] sm:$0xff]
    %v262 = vld [vmem:[#allocation9 + $0x40] sm:$0xff]
    %v263 = vld [vmem:[#allocation9 + $0x48] sm:$0xff]
    %v264 = vld [vmem:[#allocation9 + $0x50] sm:$0xff]
    %v265 = vld [vmem:[#allocation9 + $0x58] sm:$0xff]
    %v266 = vld [vmem:[#allocation9 + $0x60] sm:$0xff]
    %v267 = vld [vmem:[#allocation9 + $0x68] sm:$0xff]
    %v268 = vld [vmem:[#allocation9 + $0x70] sm:$0xff]
    %v269 = vld [vmem:[#allocation9 + $0x78] sm:$0xff]
    %v270 = vld [vmem:[#allocation9 + $0x80] sm:$0xff]
    %v271 = vld [vmem:[#allocation9 + $0x88] sm:$0xff]
    %v272 = vld [vmem:[#allocation9 + $0x90] sm:$0xff]
    %v273 = vld [vmem:[#allocation9 + $0x98] sm:$0xff]
    %v274 = vld [vmem:[#allocation9 + $0xa0] sm:$0xff]
    %v275 = vld [vmem:[#allocation9 + $0xa8] sm:$0xff]
    %v276 = vld [vmem:[#allocation9 + $0xb0] sm:$0xff]
    %v277 = vld [vmem:[#allocation9 + $0xb8] sm:$0xff]
    %v278 = vld [vmem:[#allocation9 + $0xc0] sm:$0xff]
    %v279 = vld [vmem:[#allocation9 + $0xc8] sm:$0xff]
    %v280 = vld [vmem:[#allocation9 + $0xd0] sm:$0xff]
    %v281 = vld [vmem:[#allocation9 + $0xd8] sm:$0xff]
    %v282 = vld [vmem:[#allocation9 + $0xe0] sm:$0xff]
    %v283 = vld [vmem:[#allocation9 + $0xe8] sm:$0xff]
    %v284 = vld [vmem:[#allocation9 + $0xf0] sm:$0xff]
    %v285 = vld [vmem:[#allocation9 + $0xf8] sm:$0xff]
    %v286 = vld [vmem:[%s6] sm:$0x3]
    %v288 = vlaneseq
    %v289 = vshrl.u32 %v288, 7
    %v290 = vsub.s32 0, %v289
    %v291 = vrot.slane %v286, %v290
    %v292 = vlaneseq
    %v293 = vshrl.u32 %v292, 7
    %v294 = vsub.s32 1, %v293
    %v295 = vrot.slane %v286, %v294
    %v330 = vunpack.c.l.b16 %v254
    %v331 = vunpack.c.h.b16 %v254
    %v332 = vunpack.c.l.b16 %v255
    %v333 = vunpack.c.h.b16 %v255
    %v334 = vunpack.c.l.b16 %v256
    %v335 = vunpack.c.h.b16 %v256
    %v336 = vunpack.c.l.b16 %v257
    %v337 = vunpack.c.h.b16 %v257
    %v338 = vunpack.c.l.b16 %v258
    %v339 = vunpack.c.h.b16 %v258
    %v340 = vunpack.c.l.b16 %v259
    %v341 = vunpack.c.h.b16 %v259
    %v342 = vunpack.c.l.b16 %v260
    %v343 = vunpack.c.h.b16 %v260
    %v344 = vunpack.c.l.b16 %v261
    %v345 = vunpack.c.h.b16 %v261
    %v346 = vunpack.c.l.b16 %v262
    %v347 = vunpack.c.h.b16 %v262
    %v348 = vunpack.c.l.b16 %v263
    %v349 = vunpack.c.h.b16 %v263
    %v350 = vunpack.c.l.b16 %v264
    %v351 = vunpack.c.h.b16 %v264
    %v352 = vunpack.c.l.b16 %v265
    %v353 = vunpack.c.h.b16 %v265
    %v354 = vunpack.c.l.b16 %v266
    %v355 = vunpack.c.h.b16 %v266
    %v356 = vunpack.c.l.b16 %v267
    %v357 = vunpack.c.h.b16 %v267
    %v358 = vunpack.c.l.b16 %v268
    %v359 = vunpack.c.h.b16 %v268
    %v360 = vunpack.c.l.b16 %v269
    %v361 = vunpack.c.h.b16 %v269
    %v362 = vunpack.c.l.b16 %v270
    %v363 = vunpack.c.h.b16 %v270
    %v364 = vunpack.c.l.b16 %v271
    %v365 = vunpack.c.h.b16 %v271
    %v366 = vunpack.c.l.b16 %v272
    %v367 = vunpack.c.h.b16 %v272
    %v368 = vunpack.c.l.b16 %v273
    %v369 = vunpack.c.h.b16 %v273
    %v370 = vunpack.c.l.b16 %v274
    %v371 = vunpack.c.h.b16 %v274
    %v372 = vunpack.c.l.b16 %v275
    %v373 = vunpack.c.h.b16 %v275
    %v374 = vunpack.c.l.b16 %v276
    %v375 = vunpack.c.h.b16 %v276
    %v376 = vunpack.c.l.b16 %v277
    %v377 = vunpack.c.h.b16 %v277
    %v378 = vunpack.c.l.b16 %v278
    %v379 = vunpack.c.h.b16 %v278
    %v380 = vunpack.c.l.b16 %v279
    %v381 = vunpack.c.h.b16 %v279
    %v382 = vunpack.c.l.b16 %v280
    %v383 = vunpack.c.h.b16 %v280
    %v384 = vunpack.c.l.b16 %v281
    %v385 = vunpack.c.h.b16 %v281
    %v386 = vunpack.c.l.b16 %v282
    %v387 = vunpack.c.h.b16 %v282
    %v388 = vunpack.c.l.b16 %v283
    %v389 = vunpack.c.h.b16 %v283
    %v390 = vunpack.c.l.b16 %v284
    %v391 = vunpack.c.h.b16 %v284
    %v392 = vunpack.c.l.b16 %v285
    %v393 = vunpack.c.h.b16 %v285
    %v394 = vpack.c.b16 %v332, %v330
    %v395 = vpack.c.b16 %v333, %v331
    %v396 = vpack.c.b16 %v336, %v334
    %v397 = vpack.c.b16 %v337, %v335
    %v398 = vpack.c.b16 %v340, %v338
    %v399 = vpack.c.b16 %v341, %v339
    %v400 = vpack.c.b16 %v344, %v342
    %v401 = vpack.c.b16 %v345, %v343
    %v402 = vpack.c.b16 %v348, %v346
    %v403 = vpack.c.b16 %v349, %v347
    %v404 = vpack.c.b16 %v352, %v350
    %v405 = vpack.c.b16 %v353, %v351
    %v406 = vpack.c.b16 %v356, %v354
    %v407 = vpack.c.b16 %v357, %v355
    %v408 = vpack.c.b16 %v360, %v358
    %v409 = vpack.c.b16 %v361, %v359
    %v410 = vpack.c.b16 %v364, %v362
    %v411 = vpack.c.b16 %v365, %v363
    %v412 = vpack.c.b16 %v368, %v366
    %v413 = vpack.c.b16 %v369, %v367
    %v414 = vpack.c.b16 %v372, %v370
    %v415 = vpack.c.b16 %v373, %v371
    %v416 = vpack.c.b16 %v376, %v374
    %v417 = vpack.c.b16 %v377, %v375
    %v418 = vpack.c.b16 %v380, %v378
    %v419 = vpack.c.b16 %v381, %v379
    %v420 = vpack.c.b16 %v384, %v382
    %v421 = vpack.c.b16 %v385, %v383
    %v422 = vpack.c.b16 %v388, %v386
    %v423 = vpack.c.b16 %v389, %v387
    %v424 = vpack.c.b16 %v392, %v390
    %v425 = vpack.c.b16 %v393, %v391
    %458 = vmatprep.subr.bf16.mxu0 %v395
    %459 = vmatpush1.bf16.msra.mxu0 %v394
    %460 = vmatprep.subr.bf16.mxu0 %v397
    %461 = vmatpush1.bf16.msra.mxu0 %v396
    %462 = vmatprep.subr.bf16.mxu0 %v399
    %463 = vmatpush1.bf16.msra.mxu0 %v398
    %464 = vmatprep.subr.bf16.mxu0 %v401
    %465 = vmatpush1.bf16.msra.mxu0 %v400
    %466 = vmatprep.subr.bf16.mxu0 %v403
    %467 = vmatpush1.bf16.msra.mxu0 %v402
    %468 = vmatprep.subr.bf16.mxu0 %v405
    %469 = vmatpush1.bf16.msra.mxu0 %v404
    %470 = vmatprep.subr.bf16.mxu0 %v407
    %471 = vmatpush1.bf16.msra.mxu0 %v406
    %472 = vmatprep.subr.bf16.mxu0 %v409
    %473 = vmatpush1.bf16.msra.mxu0 %v408
    %474 = vmatprep.subr.bf16.mxu0 %v411
    %475 = vmatpush1.bf16.msra.mxu0 %v410
    %476 = vmatprep.subr.bf16.mxu0 %v413
    %477 = vmatpush1.bf16.msra.mxu0 %v412
    %478 = vmatprep.subr.bf16.mxu0 %v415
    %479 = vmatpush1.bf16.msra.mxu0 %v414
    %480 = vmatprep.subr.bf16.mxu0 %v417
    %481 = vmatpush1.bf16.msra.mxu0 %v416
    %482 = vmatprep.subr.bf16.mxu0 %v419
    %483 = vmatpush1.bf16.msra.mxu0 %v418
    %484 = vmatprep.subr.bf16.mxu0 %v421
    %485 = vmatpush1.bf16.msra.mxu0 %v420
    %486 = vmatprep.subr.bf16.mxu0 %v423
    %487 = vmatpush1.bf16.msra.mxu0 %v422
    %488 = vmatprep.subr.bf16.mxu0 %v425
    %489 = vmatpush1.bf16.msra.mxu0 %v424
    %490 = vmatprep.mubr.bf16.mxu0 %v253
    %491 = vmatmul.mubr.bf16.gmra.mrb[0].mxu0 %v252
    %v492 = vpop.f32.mrb[0].mxu0
    %v493 = vadd.f32 %v291, %v492
    %v494 = vpop.f32.mrb[0].mxu0
    %v495 = vadd.f32 %v295, %v494
    %v496 = vpop.f32.mrb[0].mxu0
    %v497 = vpop.f32.mrb[0].mxu0
    %498 = vdwg.mxu0
    %v499 = vpack.c.bf16 %v493, %v493
    %v500 = vpack.c.bf16 %v495, %v495
    %v501 = vmax.bf16 %v499, 0
    %v502 = vmax.bf16 %v500, 0
    %v503 = vld [vmem:[#allocation11] sm:$0xf]
    %v504 = vld [vmem:[#allocation11 + $0x4] sm:$0xf]
    %v505 = vld [vmem:[#allocation11 + $0x8] sm:$0xf]
    %v506 = vld [vmem:[#allocation11 + $0xc] sm:$0xf]
    %v507 = vld [vmem:[#allocation11 + $0x10] sm:$0xf]
    %v508 = vld [vmem:[#allocation11 + $0x14] sm:$0xf]
    %v509 = vld [vmem:[#allocation11 + $0x18] sm:$0xf]
    %v510 = vld [vmem:[#allocation11 + $0x1c] sm:$0xf]
    %v511 = vld [vmem:[#allocation11 + $0x20] sm:$0xf]
    %v512 = vld [vmem:[#allocation11 + $0x24] sm:$0xf]
    %v513 = vld [vmem:[#allocation11 + $0x28] sm:$0xf]
    %v514 = vld [vmem:[#allocation11 + $0x2c] sm:$0xf]
    %v515 = vld [vmem:[#allocation11 + $0x30] sm:$0xf]
    %v516 = vld [vmem:[#allocation11 + $0x34] sm:$0xf]
    %v517 = vld [vmem:[#allocation11 + $0x38] sm:$0xf]
    %v518 = vld [vmem:[#allocation11 + $0x3c] sm:$0xf]
    %v519 = vld [vmem:[#allocation11 + $0x40] sm:$0xf]
    %v520 = vld [vmem:[#allocation11 + $0x44] sm:$0xf]
    %v521 = vld [vmem:[#allocation11 + $0x48] sm:$0xf]
    %v522 = vld [vmem:[#allocation11 + $0x4c] sm:$0xf]
    %v523 = vld [vmem:[#allocation11 + $0x50] sm:$0xf]
    %v524 = vld [vmem:[#allocation11 + $0x54] sm:$0xf]
    %v525 = vld [vmem:[#allocation11 + $0x58] sm:$0xf]
    %v526 = vld [vmem:[#allocation11 + $0x5c] sm:$0xf]
    %v527 = vld [vmem:[#allocation11 + $0x60] sm:$0xf]
    %v528 = vld [vmem:[#allocation11 + $0x64] sm:$0xf]
    %v529 = vld [vmem:[#allocation11 + $0x68] sm:$0xf]
    %v530 = vld [vmem:[#allocation11 + $0x6c] sm:$0xf]
    %v531 = vld [vmem:[#allocation11 + $0x70] sm:$0xf]
    %v532 = vld [vmem:[#allocation11 + $0x74] sm:$0xf]
    %v533 = vld [vmem:[#allocation11 + $0x78] sm:$0xf]
    %v534 = vld [vmem:[#allocation11 + $0x7c] sm:$0xf]
    %v535 = vld [vmem:[%s8] sm:$0x1]
    %v537 = vlaneseq
    %v538 = vshrl.u32 %v537, 7
    %v539 = vsub.s32 0, %v538
    %v540 = vrot.slane %v535, %v539
    %v574 = vunpack.c.l.b16 %v503
    %v575 = vunpack.c.l.b16 %v504
    %v576 = vunpack.c.l.b16 %v505
    %v577 = vunpack.c.l.b16 %v506
    %v578 = vunpack.c.l.b16 %v507
    %v579 = vunpack.c.l.b16 %v508
    %v580 = vunpack.c.l.b16 %v509
    %v581 = vunpack.c.l.b16 %v510
    %v582 = vunpack.c.l.b16 %v511
    %v583 = vunpack.c.l.b16 %v512
    %v584 = vunpack.c.l.b16 %v513
    %v585 = vunpack.c.l.b16 %v514
    %v586 = vunpack.c.l.b16 %v515
    %v587 = vunpack.c.l.b16 %v516
    %v588 = vunpack.c.l.b16 %v517
    %v589 = vunpack.c.l.b16 %v518
    %v590 = vunpack.c.l.b16 %v519
    %v591 = vunpack.c.l.b16 %v520
    %v592 = vunpack.c.l.b16 %v521
    %v593 = vunpack.c.l.b16 %v522
    %v594 = vunpack.c.l.b16 %v523
    %v595 = vunpack.c.l.b16 %v524
    %v596 = vunpack.c.l.b16 %v525
    %v597 = vunpack.c.l.b16 %v526
    %v598 = vunpack.c.l.b16 %v527
    %v599 = vunpack.c.l.b16 %v528
    %v600 = vunpack.c.l.b16 %v529
    %v601 = vunpack.c.l.b16 %v530
    %v602 = vunpack.c.l.b16 %v531
    %v603 = vunpack.c.l.b16 %v532
    %v604 = vunpack.c.l.b16 %v533
    %v605 = vunpack.c.l.b16 %v534
    %v606 = vpack.c.b16 %v575, %v574
    %v607 = vpack.c.b16 %v577, %v576
    %v608 = vpack.c.b16 %v579, %v578
    %v609 = vpack.c.b16 %v581, %v580
    %v610 = vpack.c.b16 %v583, %v582
    %v611 = vpack.c.b16 %v585, %v584
    %v612 = vpack.c.b16 %v587, %v586
    %v613 = vpack.c.b16 %v589, %v588
    %v614 = vpack.c.b16 %v591, %v590
    %v615 = vpack.c.b16 %v593, %v592
    %v616 = vpack.c.b16 %v595, %v594
    %v617 = vpack.c.b16 %v597, %v596
    %v618 = vpack.c.b16 %v599, %v598
    %v619 = vpack.c.b16 %v601, %v600
    %v620 = vpack.c.b16 %v603, %v602
    %v621 = vpack.c.b16 %v605, %v604
    %638 = vmatprep.subr.bf16.mxu0 0
    %639 = vmatpush1.bf16.msra.mxu0 %v606
    %640 = vmatprep.subr.bf16.mxu0 0
    %641 = vmatpush1.bf16.msra.mxu0 %v607
    %642 = vmatprep.subr.bf16.mxu0 0
    %643 = vmatpush1.bf16.msra.mxu0 %v608
    %644 = vmatprep.subr.bf16.mxu0 0
    %645 = vmatpush1.bf16.msra.mxu0 %v609
    %646 = vmatprep.subr.bf16.mxu0 0
    %647 = vmatpush1.bf16.msra.mxu0 %v610
    %648 = vmatprep.subr.bf16.mxu0 0
    %649 = vmatpush1.bf16.msra.mxu0 %v611
    %650 = vmatprep.subr.bf16.mxu0 0
    %651 = vmatpush1.bf16.msra.mxu0 %v612
    %652 = vmatprep.subr.bf16.mxu0 0
    %653 = vmatpush1.bf16.msra.mxu0 %v613
    %654 = vmatprep.subr.bf16.mxu0 0
    %655 = vmatpush1.bf16.msra.mxu0 %v614
    %656 = vmatprep.subr.bf16.mxu0 0
    %657 = vmatpush1.bf16.msra.mxu0 %v615
    %658 = vmatprep.subr.bf16.mxu0 0
    %659 = vmatpush1.bf16.msra.mxu0 %v616
    %660 = vmatprep.subr.bf16.mxu0 0
    %661 = vmatpush1.bf16.msra.mxu0 %v617
    %662 = vmatprep.subr.bf16.mxu0 0
    %663 = vmatpush1.bf16.msra.mxu0 %v618
    %664 = vmatprep.subr.bf16.mxu0 0
    %665 = vmatpush1.bf16.msra.mxu0 %v619
    %666 = vmatprep.subr.bf16.mxu0 0
    %667 = vmatpush1.bf16.msra.mxu0 %v620
    %668 = vmatprep.subr.bf16.mxu0 0
    %669 = vmatpush1.bf16.msra.mxu0 %v621
    %670 = vmatprep.mubr.bf16.mxu0 %v502
    %671 = vmatmul.mubr.bf16.gmra.mrb[0].mxu0 %v501
    %v672 = vpop.f32.mrb[0].mxu0
    %v673 = vadd.f32 %v540, %v672
    %v674 = vpop.f32.mrb[0].mxu0
    %v675 = vpop.f32.mrb[0].mxu0
    %v676 = vpop.f32.mrb[0].mxu0
    %677 = vdwg.mxu0
    %v678 = vpack.c.bf16 %v673, %v673
    %v679 = vtanh.bf16.pop %v678
    %v680 = vld [vmem:[%s9] sm:$0x1]
    %v681 = vld [vmem:[#allocation2] sm:$0x1]
    %683 = vset.pattern.permute.xlu0 0
    %684 = vperm.xlu0 %683, %v681
    %v685 = vpop.permute.xlu0 %684
    %v687 = vlaneseq
    %v688 = vshrl.u32 %v687, 7
    %v689 = vsub.s32 0, %v688
    %v690 = vrot.slane %v685, %v689
    %691 = vmatprep.subr.bf16.mxu0 0
    %692 = vmatpush1.bf16.xpose.msra.mxu0 %v679
    %693 = vmatprep.subr.bf16.mxu0 0
    %694 = vmatpush1.bf16.xpose.msra.mxu0 0
    %695 = vmatprep.subr.bf16.mxu0 0
    %696 = vmatpush1.bf16.xpose.msra.mxu0 0
    %697 = vmatprep.subr.bf16.mxu0 0
    %698 = vmatpush1.bf16.xpose.msra.mxu0 0
    %699 = vmatprep.subr.bf16.mxu0 0
    %700 = vmatpush1.bf16.xpose.msra.mxu0 0
    %701 = vmatprep.subr.bf16.mxu0 0
    %702 = vmatpush1.bf16.xpose.msra.mxu0 0
    %703 = vmatprep.subr.bf16.mxu0 0
    %704 = vmatpush1.bf16.xpose.msra.mxu0 0
    %705 = vmatprep.subr.bf16.mxu0 0
    %706 = vmatpush1.bf16.xpose.msra.mxu0 0
    %707 = vmatprep.subr.bf16.mxu0 0
    %708 = vmatpush1.bf16.xpose.msra.mxu0 0
    %709 = vmatprep.subr.bf16.mxu0 0
    %710 = vmatpush1.bf16.xpose.msra.mxu0 0
    %711 = vmatprep.subr.bf16.mxu0 0
    %712 = vmatpush1.bf16.xpose.msra.mxu0 0
    %713 = vmatprep.subr.bf16.mxu0 0
    %714 = vmatpush1.bf16.xpose.msra.mxu0 0
    %715 = vmatprep.subr.bf16.mxu0 0
    %716 = vmatpush1.bf16.xpose.msra.mxu0 0
    %717 = vmatprep.subr.bf16.mxu0 0
    %718 = vmatpush1.bf16.xpose.msra.mxu0 0
    %719 = vmatprep.subr.bf16.mxu0 0
    %720 = vmatpush1.bf16.xpose.msra.mxu0 0
    %721 = vmatprep.subr.bf16.mxu0 0
    %722 = vmatpush1.bf16.xpose.msra.mxu0 0
    %723 = vmatprep.mubr.bf16.mxu0 0
    %724 = vmatmul.mubr.bf16.gmra.mrb[0].mxu0 %v680
    %v725 = vpop.f32.mrb[0].mxu0
    %v726 = vadd.f32 %v690, %v725
    %v727 = vpop.f32.mrb[0].mxu0
    %v728 = vpop.f32.mrb[0].mxu0
    %v729 = vpop.f32.mrb[0].mxu0
    %730 = vdwg.mxu0
    %vm731 = vcmask 57344
    %732 = vst.msk [vmem:[#allocation12] sm:$0x1] %vm731, %v726
    // Predicated region
    $region66: #{tpu_custom_call.1} parent=1 // pred_check
      _
    $region67: #{tpu_custom_call.1} parent=1 // pred_check_branch
      %734 = sbr.rel (0) target = $region69
    $region68: #{tpu_custom_call.1} parent=1 // pred_region
      %s736 = ssub.s32 16, 16
      %737 = vsyncadd [#allocation5], %s736
      %s739 = sshll.u32 [#allocation12], 4
      %s740 = int_to_ptr.vmem [resolvable:$true] %s739
      %742 = dma.vmem_to_hbm [thread:$0]  %s740, 16, %s11, [#allocation5]
    $region69: #{tpu_custom_call.1} parent=1 // pred_fallthru
      _
    // Predicated region
    $region70: #{tpu_custom_call.1} parent=1 // pred_check
      _
    $region71: #{tpu_custom_call.1} parent=1 // pred_check_branch
      %744 = sbr.rel (0) target = $region73
    $region72: #{tpu_custom_call.1} parent=1 // pred_region
      %745 = dma.done [#allocation5], 16
    $region73: #{tpu_custom_call.1} parent=1 // pred_fallthru
      _
    %746 = vsyncpa [#allocation4], 1
    %747 = vsyncpa [#allocation7], 1
    %748 = vsyncpa [#allocation10], 1
    %749 = vsyncpa [#allocation5], 1

</llo_original>
